<compile_context>
chip_gen: v7x
topology: tpu7x:2x2x1
jax: 0.10.0
libtpu: 0.0.40
codegen_flags: <defaults>
</compile_context>

<pallas_src>
import numpy as np
import jax
import jax.numpy as jnp
from jax.experimental import pallas as pl
from jax.experimental.pallas import tpu as pltpu

EPS = 1e-6            # nn.PairwiseDistance(eps=1e-6): dist = ||x1 - x2 + eps||_2
D = 128               # feature dim = full lane width
MAX_LABELS = 4        # label slots (bank groups)
MAX_PER_LABEL = 8     # prototype rows per label (multiple of 8 sublanes)
MAX_P = MAX_LABELS * MAX_PER_LABEL   # 32 bank rows total
PACK = 128            # lane-dense packed scalar-result row width


# ------------------------------ fused kernel --------------------------------

def _gcpl_fused_kernel(iparams_ref, fparams_ref, feat_ref, bank_ref, sc_ref,
                       new_bank_ref, new_sc_ref, out_ref):
    """assign_prototype + compute_probability + p_loss, fully fused.

    Branchless: the append-vs-update decision, the written row and all masks
    are one-hot / (1,1) vector values, so no scalar extraction from vregs and
    no data-dependent control flow is needed.
    """
    g = iparams_ref[0]                       # label slot (scalar int32, SMEM)
    thr = fparams_ref[0]
    gamma = fparams_ref[1]
    lam = fparams_ref[2]

    lab_start = g * MAX_PER_LABEL            # scalar int32

    f = feat_ref[...]                        # (1, D)
    fb = jnp.broadcast_to(f, (MAX_P, D))     # hoisted broadcast, reused 3x
    bank = bank_ref[...]                     # (MAX_P, D)
    sc = sc_ref[...]                         # (MAX_P, 1) per-row sample counts (0 = empty)

    row = jax.lax.broadcasted_iota(jnp.int32, (MAX_P, 1), 0)
    rowf = row.astype(jnp.float32)
    in_label = jnp.logical_and(row >= lab_start, row < lab_start + MAX_PER_LABEL)
    in_label_f = in_label.astype(jnp.float32)
    valid_pre = sc > 0.0

    # ---- assign: d^2 to the label's existing prototypes (pre-update bank) ----
    diff = fb - bank + EPS
    d2_pre = jnp.sum(diff * diff, axis=-1, keepdims=True)          # (MAX_P, 1)

    lab_valid = jnp.logical_and(in_label, valid_pre)
    c = jnp.sum(lab_valid.astype(jnp.float32), keepdims=True)      # (1,1) protos for label
    d2_lab = jnp.where(lab_valid, d2_pre, jnp.inf)
    min_d2 = jnp.min(d2_lab, keepdims=True)                        # (1,1)
    # first row achieving the min (matches torch .min(dim=0) tie-break)
    min_idx = jnp.min(jnp.where(d2_lab == min_d2, rowf, float(MAX_P)),
                      keepdims=True)                               # (1,1)
    min_dist = jnp.sqrt(min_d2)
    do_update = jnp.logical_and(c > 0.0, min_dist < thr)           # (1,1) bool

    # Row written this call: the argmin row (update) or the next free row
    # (append; new label has c == 0 so it appends at lab_start).
    app_row = lab_start.astype(jnp.float32) + c
    closest = jnp.where(do_update, min_idx, app_row)               # (1,1)
    write_mask = (rowf == closest).astype(jnp.float32) * in_label_f  # one-hot (MAX_P,1)
    # TODO(synk): fixed per-label capacity (MAX_PER_LABEL); appends beyond it
    # are dropped (the reference's Python list is unbounded).

    # ---- on-device prototype update: running mean or append ----
    new_val = jnp.where(do_update, (bank * sc + fb) / (sc + 1.0), fb)  # (MAX_P, D)
    new_bank = jnp.where(write_mask > 0.5, new_val, bank)
    new_sc = sc + write_mask
    new_bank_ref[...] = new_bank          # aliased with the input bank buffer
    new_sc_ref[...] = new_sc              # aliased with the input counts buffer

    # ---- loss over the post-update bank ----
    diff2 = fb - new_bank + EPS
    d2 = jnp.sum(diff2 * diff2, axis=-1, keepdims=True)            # (MAX_P, 1)
    valid_f = (new_sc > 0.0).astype(jnp.float32)
    e = jnp.exp(-gamma * d2) * valid_f
    one = jnp.sum(e, keepdims=True)                                # (1,1)
    lab_sum = jnp.sum(e * in_label_f, keepdims=True)               # (1,1)
    prob = 1e-6 + jnp.where(one > 0.0, lab_sum / one, one + 0.1)
    dce = -jnp.log(prob)
    p2 = jnp.sum(d2 * write_mask, keepdims=True)   # ||f - closest + eps||^2
    loss = dce + lam * p2                                          # (1,1)

    # Lane-dense packed result row (unmasked vst): lane 0 = loss,
    # lanes 1/2 carry diagnostics (closest row, update flag) - never read
    # synchronously by the host.
    lane = jax.lax.broadcasted_iota(jnp.int32, (1, PACK), 1)
    out_ref[...] = jnp.where(lane == 0, loss,
                   jnp.where(lane == 1, closest,
                   jnp.where(lane == 2, do_update.astype(jnp.float32), 0.0)))


def _fused_call(iparams, fparams, feature, bank, sc):
    return pl.pallas_call(
        _gcpl_fused_kernel,
        out_shape=(
            jax.ShapeDtypeStruct((MAX_P, D), jnp.float32),   # new bank
            jax.ShapeDtypeStruct((MAX_P, 1), jnp.float32),   # new sample counts
            jax.ShapeDtypeStruct((1, PACK), jnp.float32),    # packed loss row
        ),
        in_specs=[
            pl.BlockSpec(memory_space=pltpu.MemorySpace.SMEM),   # iparams: [label slot]
            pl.BlockSpec(memory_space=pltpu.MemorySpace.SMEM),   # fparams: [thr, gamma, lambda]
            pl.BlockSpec(memory_space=pltpu.MemorySpace.VMEM),   # feature (1, D)
            pl.BlockSpec(memory_space=pltpu.MemorySpace.VMEM),   # bank (MAX_P, D)
            pl.BlockSpec(memory_space=pltpu.MemorySpace.VMEM),   # sample counts (MAX_P, 1)
        ],
        out_specs=(
            pl.BlockSpec(memory_space=pltpu.MemorySpace.VMEM),
            pl.BlockSpec(memory_space=pltpu.MemorySpace.VMEM),
            pl.BlockSpec(memory_space=pltpu.MemorySpace.VMEM),
        ),
        # bank -> new bank, counts -> new counts: in-place state update.
        input_output_aliases={3: 0, 4: 1},
    )(iparams, fparams, feature, bank, sc)


@jax.jit
def _gcpl_step(iparams, fparams, feature, bank, sc):
    new_bank, new_sc, packed = _fused_call(iparams, fparams, feature, bank, sc)
    return packed[0, 0].reshape(1), new_bank, new_sc


# ------------------------- device-resident state ----------------------------

class PrototypeBank:
    """Device-resident replacement for the host dict of Prototypes lists.

    bank[g*MAX_PER_LABEL + i] is prototype i of label slot g; counts[row] > 0
    marks a live row (counts[row] is that prototype's sample count).
    """
    # TODO(synk): the reference's per-label Python lists / sample_counts are not
    # mirrored on host (that would need a blocking readback per call); all
    # prototype state lives in these two device arrays.

    def __init__(self):
        self.bank = jnp.zeros((MAX_P, D), jnp.float32)
        self.counts = jnp.zeros((MAX_P, 1), jnp.float32)
        self._slot = {}        # label -> group index (host bookkeeping only)
        self._slot_arr = {}    # cached (1,) int32 arrays, one H2D per label ever

    def slot(self, label):
        if label not in self._slot:
            g = len(self._slot)
            if g >= MAX_LABELS:
                raise ValueError("increase MAX_LABELS")
            self._slot[label] = g
            self._slot_arr[g] = jnp.array([g], jnp.int32)
        return self._slot_arr[self._slot[label]]

    def __contains__(self, label):
        return label in self._slot


class GCPLLoss:
    """Pallas TPU port of the PyTorch GCPLLoss forward pass.

    One fused pallas_call per sample; no device->host synchronization."""

    def __init__(self, threshold, gamma=0.1, lambda_=0.1):
        self.threshold = threshold
        self.gamma = gamma
        self.lambda_ = lambda_
        self._fparams = jnp.array([threshold, gamma, lambda_], jnp.float32)

    def __call__(self, feature, label, all_prototypes):
        iparams = all_prototypes.slot(label)
        loss, all_prototypes.bank, all_prototypes.counts = _gcpl_step(
            iparams, self._fparams, feature,
            all_prototypes.bank, all_prototypes.counts)
        return loss            # shape (1,), same as the torch module


# ----------------- pure-numpy reference (PyTorch transliteration) -----------

class _RefState:
    def __init__(self):
        self.protos = {}       # label -> list of (D,) float64
        self.counts = {}       # label -> list of ints


def _ref_forward(state, feature, label, threshold, gamma, lam):
    f = np.asarray(feature, np.float64).reshape(-1)
    eps = 1e-6
    # assign_prototype
    if label not in state.protos:
        state.protos[label] = [f.copy()]
        state.counts[label] = [1]
        closest = f.copy()
    else:
        P = np.stack(state.protos[label])
        dists = np.sqrt(((f[None, :] - P + eps) ** 2).sum(-1))
        idx = int(np.argmin(dists))
        if dists[idx] < threshold:
            c = state.counts[label][idx]
            state.protos[label][idx] = (state.protos[label][idx] * c + f) / (c + 1)
            state.counts[label][idx] = c + 1
            closest = state.protos[label][idx].copy()
        else:
            state.protos[label].append(f.copy())
            state.counts[label].append(1)
            closest = f.copy()
    # compute_probability
    one = 0.0
    for l in state.protos:
        P = np.stack(state.protos[l])
        d2 = ((f[None, :] - P + eps) ** 2).sum(-1)
        one += np.exp(-gamma * d2).sum()
    P = np.stack(state.protos[label])
    d2l = ((f[None, :] - P + eps) ** 2).sum(-1)
    prob = 1e-6
    if one > 0.0:
        prob += np.exp(-gamma * d2l).sum() / one
    else:
        prob += one + 0.1
    dce = -np.log(prob)
    p_loss = ((f - closest + eps) ** 2).sum()
    return dce + lam * p_loss


# --------------------------------- main --------------------------------------

if __name__ == "__main__":
    key = jax.random.PRNGKey(0)
    keys = jax.random.split(key, 6)
    feats = [jax.random.normal(k, (1, D), jnp.float32) for k in keys]
    labels = [0, 1, 0, 1, 2, 0]   # new / new / update / update / new / update

    loss_fn = GCPLLoss(threshold=20.0, gamma=0.1, lambda_=0.1)
    state = PrototypeBank()

    # Sequential training-style calls; nothing blocks until the final readback.
    losses = [loss_fn(f, l, state) for f, l in zip(feats, labels)]
    losses = jax.block_until_ready(jnp.concatenate(losses))

    # Correctness check against a direct numpy transliteration of the PyTorch
    # reference (f64 on host vs f32 fused kernel on device).
    ref_state = _RefState()
    ref = np.array([_ref_forward(ref_state, np.asarray(f), l, 20.0, 0.1, 0.1)
                    for f, l in zip(feats, labels)], np.float64)

    assert losses.shape == (len(feats),)
    assert bool(jnp.all(jnp.isfinite(losses)))
    np.testing.assert_allclose(np.asarray(losses, np.float64), ref,
                               rtol=5e-3, atol=5e-3)
    print("KERNEL_OK")
</pallas_src>

<mosaic_0001>
module attributes {stable_mosaic.version = 11 : i64} {
  func.func @_gcpl_fused_kernel(%arg0: memref<1xi32, #tpu.memory_space<smem>>, %arg1: memref<3xf32, #tpu.memory_space<smem>>, %arg2: memref<1x128xf32, #tpu.memory_space<vmem>>, %arg3: memref<32x128xf32, #tpu.memory_space<vmem>>, %arg4: memref<32x1xf32, #tpu.memory_space<vmem>>, %arg5: memref<32x128xf32, #tpu.memory_space<vmem>>, %arg6: memref<32x1xf32, #tpu.memory_space<vmem>>, %arg7: memref<1x128xf32, #tpu.memory_space<vmem>>) attributes {dimension_semantics = [], scalar_prefetch = 0 : i64, scratch_operands = 0 : i64, tpu.core_type = #tpu.core_type<tc>} {
    %c0 = arith.constant 0 : index
    %0 = memref.load %arg0[%c0] : memref<1xi32, #tpu.memory_space<smem>>
    %c0_0 = arith.constant 0 : index
    %1 = memref.load %arg1[%c0_0] : memref<3xf32, #tpu.memory_space<smem>>
    %c1 = arith.constant 1 : index
    %2 = memref.load %arg1[%c1] : memref<3xf32, #tpu.memory_space<smem>>
    %c2 = arith.constant 2 : index
    %3 = memref.load %arg1[%c2] : memref<3xf32, #tpu.memory_space<smem>>
    %c8_i32 = arith.constant 8 : i32
    %4 = arith.muli %0, %c8_i32 : i32
    %c0_1 = arith.constant 0 : index
    %c0_2 = arith.constant 0 : index
    %5 = vector.load %arg2[%c0_1, %c0_2] : memref<1x128xf32, #tpu.memory_space<vmem>>, vector<1x128xf32>
    %6 = vector.shape_cast %5 : vector<1x128xf32> to vector<1x128xf32>
    %7 = vector.broadcast %6 : vector<1x128xf32> to vector<32x128xf32>
    %c0_3 = arith.constant 0 : index
    %c0_4 = arith.constant 0 : index
    %8 = vector.load %arg3[%c0_3, %c0_4] : memref<32x128xf32, #tpu.memory_space<vmem>>, vector<32x128xf32>
    %c0_5 = arith.constant 0 : index
    %c0_6 = arith.constant 0 : index
    %9 = vector.load %arg4[%c0_5, %c0_6] : memref<32x1xf32, #tpu.memory_space<vmem>>, vector<32x1xf32>
    %10 = tpu.iota {dimensions = array<i32: 0>} : vector<32x1xi32>
    %11 = arith.sitofp %10 : vector<32x1xi32> to vector<32x1xf32>
    %12 = vector.broadcast %4 : i32 to vector<32x1xi32>
    %13 = arith.cmpi sge, %10, %12 : vector<32x1xi32>
    %c8_i32_7 = arith.constant 8 : i32
    %14 = arith.addi %4, %c8_i32_7 : i32
    %15 = vector.broadcast %14 : i32 to vector<32x1xi32>
    %16 = arith.cmpi slt, %10, %15 : vector<32x1xi32>
    %17 = arith.andi %13, %16 : vector<32x1xi1>
    %18 = arith.extui %17 : vector<32x1xi1> to vector<32x1xi32>
    %19 = arith.sitofp %18 : vector<32x1xi32> to vector<32x1xf32>
    %cst = arith.constant 0.000000e+00 : f32
    %20 = vector.broadcast %cst : f32 to vector<32x1xf32>
    %21 = arith.cmpf ogt, %9, %20 : vector<32x1xf32>
    %22 = arith.subf %7, %8 : vector<32x128xf32>
    %cst_8 = arith.constant 9.99999997E-7 : f32
    %23 = vector.broadcast %cst_8 : f32 to vector<32x128xf32>
    %24 = arith.addf %22, %23 : vector<32x128xf32>
    %25 = arith.mulf %24, %24 : vector<32x128xf32>
    %cst_9 = arith.constant dense<0.000000e+00> : vector<32xf32>
    %26 = vector.multi_reduction <add>, %25, %cst_9 [1] : vector<32x128xf32> to vector<32xf32>
    %27 = vector.shape_cast %26 : vector<32xf32> to vector<32x1xf32>
    %28 = arith.andi %17, %21 : vector<32x1xi1>
    %29 = arith.extui %28 : vector<32x1xi1> to vector<32x1xi32>
    %30 = arith.sitofp %29 : vector<32x1xi32> to vector<32x1xf32>
    %31 = vector.shape_cast %30 : vector<32x1xf32> to vector<1x32x1xf32>
    %cst_10 = arith.constant dense<0.000000e+00> : vector<1xf32>
    %32 = vector.multi_reduction <add>, %31, %cst_10 [1, 2] : vector<1x32x1xf32> to vector<1xf32>
    %33 = vector.shape_cast %32 : vector<1xf32> to vector<1x1x1xf32>
    %34 = vector.extract %33[0, 0, 0] : f32 from vector<1x1x1xf32>
    %35 = vector.broadcast %34 : f32 to vector<1x1xf32>
    %cst_11 = arith.constant 0x7F800000 : f32
    %36 = vector.broadcast %cst_11 : f32 to vector<32x1xf32>
    %37 = arith.select %28, %27, %36 : vector<32x1xi1>, vector<32x1xf32>
    %38 = vector.shape_cast %37 : vector<32x1xf32> to vector<1x32x1xf32>
    %cst_12 = arith.constant dense<0x7F800000> : vector<1xf32>
    %39 = vector.multi_reduction <minimumf>, %38, %cst_12 [1, 2] : vector<1x32x1xf32> to vector<1xf32>
    %40 = vector.shape_cast %39 : vector<1xf32> to vector<1x1x1xf32>
    %41 = vector.extract %40[0, 0, 0] : f32 from vector<1x1x1xf32>
    %42 = vector.broadcast %41 : f32 to vector<1x1xf32>
    %43 = vector.broadcast %42 : vector<1x1xf32> to vector<32x1xf32>
    %44 = arith.cmpf oeq, %37, %43 : vector<32x1xf32>
    %cst_13 = arith.constant 3.200000e+01 : f32
    %45 = vector.broadcast %cst_13 : f32 to vector<32x1xf32>
    %46 = arith.select %44, %11, %45 : vector<32x1xi1>, vector<32x1xf32>
    %47 = vector.shape_cast %46 : vector<32x1xf32> to vector<1x32x1xf32>
    %cst_14 = arith.constant dense<0x7F800000> : vector<1xf32>
    %48 = vector.multi_reduction <minimumf>, %47, %cst_14 [1, 2] : vector<1x32x1xf32> to vector<1xf32>
    %49 = vector.shape_cast %48 : vector<1xf32> to vector<1x1x1xf32>
    %50 = vector.extract %49[0, 0, 0] : f32 from vector<1x1x1xf32>
    %51 = vector.broadcast %50 : f32 to vector<1x1xf32>
    %52 = math.sqrt %42 : vector<1x1xf32>
    %cst_15 = arith.constant 0.000000e+00 : f32
    %53 = vector.broadcast %cst_15 : f32 to vector<1x1xf32>
    %54 = arith.cmpf ogt, %35, %53 : vector<1x1xf32>
    %55 = vector.broadcast %1 : f32 to vector<1x1xf32>
    %56 = arith.cmpf olt, %52, %55 : vector<1x1xf32>
    %57 = arith.andi %54, %56 : vector<1x1xi1>
    %58 = arith.sitofp %4 : i32 to f32
    %59 = vector.broadcast %58 : f32 to vector<1x1xf32>
    %60 = arith.addf %59, %35 : vector<1x1xf32>
    %61 = arith.select %57, %51, %60 : vector<1x1xi1>, vector<1x1xf32>
    %62 = vector.broadcast %61 : vector<1x1xf32> to vector<32x1xf32>
    %63 = arith.cmpf oeq, %11, %62 : vector<32x1xf32>
    %64 = arith.extui %63 : vector<32x1xi1> to vector<32x1xi32>
    %65 = arith.sitofp %64 : vector<32x1xi32> to vector<32x1xf32>
    %66 = arith.mulf %65, %19 : vector<32x1xf32>
    %67 = vector.broadcast %9 : vector<32x1xf32> to vector<32x128xf32>
    %68 = arith.mulf %8, %67 : vector<32x128xf32>
    %69 = arith.addf %68, %7 : vector<32x128xf32>
    %cst_16 = arith.constant 1.000000e+00 : f32
    %70 = vector.broadcast %cst_16 : f32 to vector<32x1xf32>
    %71 = arith.addf %9, %70 : vector<32x1xf32>
    %72 = vector.broadcast %71 : vector<32x1xf32> to vector<32x128xf32>
    %73 = arith.divf %69, %72 : vector<32x128xf32>
    %74 = vector.shape_cast %57 : vector<1x1xi1> to vector<1x1xi1>
    %75 = vector.broadcast %74 : vector<1x1xi1> to vector<32x128xi1>
    %76 = arith.select %75, %73, %7 : vector<32x128xi1>, vector<32x128xf32>
    %cst_17 = arith.constant 5.000000e-01 : f32
    %77 = vector.broadcast %cst_17 : f32 to vector<32x1xf32>
    %78 = arith.cmpf ogt, %66, %77 : vector<32x1xf32>
    %79 = vector.shape_cast %78 : vector<32x1xi1> to vector<32x1xi1>
    %80 = vector.broadcast %79 : vector<32x1xi1> to vector<32x128xi1>
    %81 = arith.select %80, %76, %8 : vector<32x128xi1>, vector<32x128xf32>
    %82 = arith.addf %9, %66 : vector<32x1xf32>
    %c0_18 = arith.constant 0 : index
    %c0_19 = arith.constant 0 : index
    %83 = vector.load %arg5[%c0_18, %c0_19] : memref<32x128xf32, #tpu.memory_space<vmem>>, vector<32x128xf32>
    tpu.vector_store %arg5[%c0_18, %c0_19], %81 {strides = array<i32>} : memref<32x128xf32, #tpu.memory_space<vmem>>, vector<32x128xf32>,
    %c0_20 = arith.constant 0 : index
    %c0_21 = arith.constant 0 : index
    %84 = vector.load %arg6[%c0_20, %c0_21] : memref<32x1xf32, #tpu.memory_space<vmem>>, vector<32x1xf32>
    tpu.vector_store %arg6[%c0_20, %c0_21], %82 {strides = array<i32>} : memref<32x1xf32, #tpu.memory_space<vmem>>, vector<32x1xf32>,
    %85 = arith.subf %7, %81 : vector<32x128xf32>
    %cst_22 = arith.constant 9.99999997E-7 : f32
    %86 = vector.broadcast %cst_22 : f32 to vector<32x128xf32>
    %87 = arith.addf %85, %86 : vector<32x128xf32>
    %88 = arith.mulf %87, %87 : vector<32x128xf32>
    %cst_23 = arith.constant dense<0.000000e+00> : vector<32xf32>
    %89 = vector.multi_reduction <add>, %88, %cst_23 [1] : vector<32x128xf32> to vector<32xf32>
    %90 = vector.shape_cast %89 : vector<32xf32> to vector<32x1xf32>
    %cst_24 = arith.constant 0.000000e+00 : f32
    %91 = vector.broadcast %cst_24 : f32 to vector<32x1xf32>
    %92 = arith.cmpf ogt, %82, %91 : vector<32x1xf32>
    %93 = arith.extui %92 : vector<32x1xi1> to vector<32x1xi32>
    %94 = arith.sitofp %93 : vector<32x1xi32> to vector<32x1xf32>
    %cst_25 = arith.constant 0.000000e+00 : f32
    %95 = arith.subf %cst_25, %2 : f32
    %96 = vector.broadcast %95 : f32 to vector<32x1xf32>
    %97 = arith.mulf %96, %90 : vector<32x1xf32>
    %98 = math.exp %97 : vector<32x1xf32>
    %99 = arith.mulf %98, %94 : vector<32x1xf32>
    %100 = vector.shape_cast %99 : vector<32x1xf32> to vector<1x32x1xf32>
    %cst_26 = arith.constant dense<0.000000e+00> : vector<1xf32>
    %101 = vector.multi_reduction <add>, %100, %cst_26 [1, 2] : vector<1x32x1xf32> to vector<1xf32>
    %102 = vector.shape_cast %101 : vector<1xf32> to vector<1x1x1xf32>
    %103 = vector.extract %102[0, 0, 0] : f32 from vector<1x1x1xf32>
    %104 = vector.broadcast %103 : f32 to vector<1x1xf32>
    %105 = arith.mulf %99, %19 : vector<32x1xf32>
    %106 = vector.shape_cast %105 : vector<32x1xf32> to vector<1x32x1xf32>
    %cst_27 = arith.constant dense<0.000000e+00> : vector<1xf32>
    %107 = vector.multi_reduction <add>, %106, %cst_27 [1, 2] : vector<1x32x1xf32> to vector<1xf32>
    %108 = vector.shape_cast %107 : vector<1xf32> to vector<1x1x1xf32>
    %109 = vector.extract %108[0, 0, 0] : f32 from vector<1x1x1xf32>
    %110 = vector.broadcast %109 : f32 to vector<1x1xf32>
    %cst_28 = arith.constant 0.000000e+00 : f32
    %111 = vector.broadcast %cst_28 : f32 to vector<1x1xf32>
    %112 = arith.cmpf ogt, %104, %111 : vector<1x1xf32>
    %113 = arith.divf %110, %104 : vector<1x1xf32>
    %cst_29 = arith.constant 1.000000e-01 : f32
    %114 = vector.broadcast %cst_29 : f32 to vector<1x1xf32>
    %115 = arith.addf %104, %114 : vector<1x1xf32>
    %116 = arith.select %112, %113, %115 : vector<1x1xi1>, vector<1x1xf32>
    %cst_30 = arith.constant 9.99999997E-7 : f32
    %117 = vector.broadcast %cst_30 : f32 to vector<1x1xf32>
    %118 = arith.addf %117, %116 : vector<1x1xf32>
    %119 = math.log %118 : vector<1x1xf32>
    %cst_31 = arith.constant 0.000000e+00 : f32
    %120 = vector.broadcast %cst_31 : f32 to vector<1x1xf32>
    %121 = arith.subf %120, %119 : vector<1x1xf32>
    %122 = arith.mulf %90, %66 : vector<32x1xf32>
    %123 = vector.shape_cast %122 : vector<32x1xf32> to vector<1x32x1xf32>
    %cst_32 = arith.constant dense<0.000000e+00> : vector<1xf32>
    %124 = vector.multi_reduction <add>, %123, %cst_32 [1, 2] : vector<1x32x1xf32> to vector<1xf32>
    %125 = vector.shape_cast %124 : vector<1xf32> to vector<1x1x1xf32>
    %126 = vector.extract %125[0, 0, 0] : f32 from vector<1x1x1xf32>
    %127 = vector.broadcast %126 : f32 to vector<1x1xf32>
    %128 = vector.broadcast %3 : f32 to vector<1x1xf32>
    %129 = arith.mulf %128, %127 : vector<1x1xf32>
    %130 = arith.addf %121, %129 : vector<1x1xf32>
    %131 = tpu.iota {dimensions = array<i32: 1>} : vector<1x128xi32>
    %c0_i32 = arith.constant 0 : i32
    %132 = vector.broadcast %c0_i32 : i32 to vector<1x128xi32>
    %133 = arith.cmpi eq, %131, %132 : vector<1x128xi32>
    %c1_i32 = arith.constant 1 : i32
    %134 = vector.broadcast %c1_i32 : i32 to vector<1x128xi32>
    %135 = arith.cmpi eq, %131, %134 : vector<1x128xi32>
    %c2_i32 = arith.constant 2 : i32
    %136 = vector.broadcast %c2_i32 : i32 to vector<1x128xi32>
    %137 = arith.cmpi eq, %131, %136 : vector<1x128xi32>
    %138 = arith.extui %57 : vector<1x1xi1> to vector<1x1xi32>
    %139 = arith.sitofp %138 : vector<1x1xi32> to vector<1x1xf32>
    %cst_33 = arith.constant 0.000000e+00 : f32
    %140 = vector.shape_cast %139 : vector<1x1xf32> to vector<1x1xf32>
    %141 = vector.broadcast %140 : vector<1x1xf32> to vector<1x128xf32>
    %142 = vector.broadcast %cst_33 : f32 to vector<1x128xf32>
    %143 = arith.select %137, %141, %142 : vector<1x128xi1>, vector<1x128xf32>
    %144 = vector.shape_cast %61 : vector<1x1xf32> to vector<1x1xf32>
    %145 = vector.broadcast %144 : vector<1x1xf32> to vector<1x128xf32>
    %146 = arith.select %135, %145, %143 : vector<1x128xi1>, vector<1x128xf32>
    %147 = vector.shape_cast %130 : vector<1x1xf32> to vector<1x1xf32>
    %148 = vector.broadcast %147 : vector<1x1xf32> to vector<1x128xf32>
    %149 = arith.select %133, %148, %146 : vector<1x128xi1>, vector<1x128xf32>
    %c0_34 = arith.constant 0 : index
    %c0_35 = arith.constant 0 : index
    %150 = vector.load %arg7[%c0_34, %c0_35] : memref<1x128xf32, #tpu.memory_space<vmem>>, vector<1x128xf32>
    tpu.vector_store %arg7[%c0_34, %c0_35], %149 {strides = array<i32>} : memref<1x128xf32, #tpu.memory_space<vmem>>, vector<1x128xf32>,
    return
  }
}

</mosaic_0001>

<llo_original>
// kernel: _gcpl_step.1
$region0: #{_gcpl_step.1}
  #allocation0 [shape = 'u32[]', space=smem, size = 0x4, offset = 0x4, fixed_abs, tag = 'smem constant byte address 0x4 - core index']
  #allocation1 [shape = 'u32[144,128]{1,0:T(1,128)}', space=vmem, size = 0x12000, scoped, tag = 'internal scratch']
  #allocation2 [shape = 's32[1]{0:T(128)S(6)}', space=smem, size = 0x200, scoped, tag = 'scoped memory for _gcpl_step.1']
  %s0 = inlined_call_operand.<no memory space> [shape: s32[1], index: 0, kind: input, shape index: {}]
  %s1 = inlined_call_operand.vmem [shape: f32[3], index: 1, kind: input, shape index: {}]
  %s2 = inlined_call_operand.vmem [shape: f32[1,128], index: 2, kind: input, shape index: {}]
  %s3 = inlined_call_operand.vmem [shape: f32[32,128], index: 3, kind: input, shape index: {}, may-alias: {3,5}]
  %s4 = inlined_call_operand.vmem [shape: f32[32,1], index: 4, kind: input, shape index: {}, may-alias: {4,6}]
  %s5 = inlined_call_operand.vmem [shape: f32[32,128], index: 5, kind: output, shape index: {0}, may-alias: {3,5}]
  %s6 = inlined_call_operand.vmem [shape: f32[32,1], index: 6, kind: output, shape index: {1}, may-alias: {4,6}]
  %s7 = inlined_call_operand.hbm [shape: f32[1,128], index: 7, kind: output, shape index: {2}]
  %8 = xla_tuple %s5, %s6, %s7
  %s9 = sld [smem:[#allocation0]]
  $region50: #{_gcpl_step.1} parent=0
    _
  %s11 = ssub.s32 1, %s9
  %s12 = scalar_select 0, %s11, %s9
  %13 = sst [smem:[#allocation2]] %s0
  $region1: #{_gcpl_step.1} parent=0
    #allocation3 [shape = 'u8[512]{0}', space=smem, size = 0x200, scoped, tag = 'input window, operand 1, single buffered']
    #allocation4 [shape = 's32[1]{0}', space=sflag, size = 0x4, scoped, tag = 'scoped memory for _gcpl_step.1']
    #allocation5 [shape = 's32[1]{0}', space=sflag, size = 0x4, scoped, tag = 'scoped memory for _gcpl_step.1']
    #allocation6 [shape = 'u8[512]{0}', space=vmem, size = 0x400, scoped, tag = 'output window, operand 2, single buffered']
    %14 = vsyncpa [#allocation5], 0
    %15 = vsyncpa [#allocation4], 0
    // Predicated region
    $region2: #{_gcpl_step.1} parent=1 // pred_check
      _
    $region3: #{_gcpl_step.1} parent=1 // pred_check_branch
      %17 = sbr.rel (0) target = $region5
    $region4: #{_gcpl_step.1} parent=1 // pred_region
      _
    $region5: #{_gcpl_step.1} parent=1 // pred_fallthru
      _
    // Predicated region
    $region6: #{_gcpl_step.1} parent=1 // pred_check
      _
    $region7: #{_gcpl_step.1} parent=1 // pred_check_branch
      %19 = sbr.rel (0) target = $region9
    $region8: #{_gcpl_step.1} parent=1 // pred_region
      %s21 = ssub.s32 16, 16
      %22 = vsyncadd [#allocation5], %s21
      %s24 = sshll.u32 %s1, 4
      %s25 = int_to_ptr.vmem [resolvable:$true] %s24
      %27 = dma.vmem_to_smem %s25, 16, [#allocation3], [#allocation5]
    $region9: #{_gcpl_step.1} parent=1 // pred_fallthru
      _
    // Predicated region
    $region10: #{_gcpl_step.1} parent=1 // pred_check
      _
    $region11: #{_gcpl_step.1} parent=1 // pred_check_branch
      %29 = sbr.rel (0) target = $region13
    $region12: #{_gcpl_step.1} parent=1 // pred_region
      _
    $region13: #{_gcpl_step.1} parent=1 // pred_fallthru
      _
    // Predicated region
    $region14: #{_gcpl_step.1} parent=1 // pred_check
      _
    $region15: #{_gcpl_step.1} parent=1 // pred_check_branch
      %31 = sbr.rel (0) target = $region17
    $region16: #{_gcpl_step.1} parent=1 // pred_region
      _
    $region17: #{_gcpl_step.1} parent=1 // pred_fallthru
      _
    // Predicated region
    $region18: #{_gcpl_step.1} parent=1 // pred_check
      _
    $region19: #{_gcpl_step.1} parent=1 // pred_check_branch
      %33 = sbr.rel (0) target = $region21
    $region20: #{_gcpl_step.1} parent=1 // pred_region
      _
    $region21: #{_gcpl_step.1} parent=1 // pred_fallthru
      _
    // Predicated region
    $region22: #{_gcpl_step.1} parent=1 // pred_check
      _
    $region23: #{_gcpl_step.1} parent=1 // pred_check_branch
      %35 = sbr.rel (0) target = $region25
    $region24: #{_gcpl_step.1} parent=1 // pred_region
      %36 = dma.done [#allocation5], 16
    $region25: #{_gcpl_step.1} parent=1 // pred_fallthru
      _
    %37 = sfence
    %s38 = sld [smem:[#allocation2]]
    %s39 = sld [smem:[#allocation3]]
    %s40 = sld [smem:[#allocation3 + $0x1]]
    %s41 = sld [smem:[#allocation3 + $0x2]]
    %s42 = smul.u32 %s38, 8
    %v43 = vld [vmem:[%s2] sm:$0x1]
    %v45 = vlaneseq
    %v46 = vshrl.u32 %v45, 7
    %v47 = vsub.s32 0, %v46
    %v48 = vrot.slane %v43, %v47
    %v50 = vld [vmem:[%s3] sm:$0xff]
    %v51 = vld [vmem:[%s3 + $0x8] sm:$0xff]
    %v52 = vld [vmem:[%s3 + $0x10] sm:$0xff]
    %v53 = vld [vmem:[%s3 + $0x18] sm:$0xff]
    %v54 = vld [vmem:[%s4] sm:$0xff]
    %v55 = vld [vmem:[%s4 + $0x8] sm:$0xff]
    %v56 = vld [vmem:[%s4 + $0x10] sm:$0xff]
    %v57 = vld [vmem:[%s4 + $0x18] sm:$0xff]
    %v58 = vlaneseq
    %v59 = vshrl.u32 %v58, 7
    %v60 = vadd.s32 %v59, 8
    %v61 = vadd.s32 %v59, 16
    %v62 = vadd.s32 %v59, 24
    %v63 = vcvt.s32.f32 %v59
    %v64 = vcvt.s32.f32 %v60
    %v65 = vcvt.s32.f32 %v61
    %v66 = vcvt.s32.f32 %v62
    %v67 = vstv %s42
    %vm68 = vcmp.ge.s32.totalorder %v59, %v67
    %vm69 = vcmp.ge.s32.totalorder %v60, %v67
    %vm70 = vcmp.ge.s32.totalorder %v61, %v67
    %vm71 = vcmp.ge.s32.totalorder %v62, %v67
    %s72 = sadd.s32 %s42, 8
    %v73 = vstv %s72
    %vm74 = vcmp.lt.s32.totalorder %v59, %v73
    %vm75 = vcmp.lt.s32.totalorder %v60, %v73
    %vm76 = vcmp.lt.s32.totalorder %v61, %v73
    %vm77 = vcmp.lt.s32.totalorder %v62, %v73
    %vm78 = vmand %vm68, %vm74
    %vm79 = vmand %vm69, %vm75
    %vm80 = vmand %vm70, %vm76
    %vm81 = vmand %vm71, %vm77
    %v82 = vsel %vm78, 1, 0
    %v83 = vsel %vm79, 1, 0
    %v84 = vsel %vm80, 1, 0
    %v85 = vsel %vm81, 1, 0
    %v86 = vcvt.s32.f32 %v82
    %v87 = vcvt.s32.f32 %v83
    %v88 = vcvt.s32.f32 %v84
    %v89 = vcvt.s32.f32 %v85
    %vm90 = vcmp.gt.f32.partialorder %v54, 0.0
    %vm91 = vcmp.gt.f32.partialorder %v55, 0.0
    %vm92 = vcmp.gt.f32.partialorder %v56, 0.0
    %vm93 = vcmp.gt.f32.partialorder %v57, 0.0
    %v94 = vsub.f32 %v48, %v50
    %v95 = vsub.f32 %v48, %v51
    %v96 = vsub.f32 %v48, %v52
    %v97 = vsub.f32 %v48, %v53
    %v98 = vadd.f32 %v94, 1e-06
    %v99 = vadd.f32 %v95, 1e-06
    %v100 = vadd.f32 %v96, 1e-06
    %v101 = vadd.f32 %v97, 1e-06
    %v102 = vmul.f32 %v98, %v98
    %v103 = vmul.f32 %v99, %v99
    %v104 = vmul.f32 %v100, %v100
    %v105 = vmul.f32 %v101, %v101
    %106 = vadd.xlane.f32.xlu0 %v102
    %v107 = vpop.xlane.xlu0 %106
    %108 = vadd.xlane.f32.xlu0 %v103
    %v109 = vpop.xlane.xlu0 %108
    %110 = vadd.xlane.f32.xlu0 %v104
    %v111 = vpop.xlane.xlu0 %110
    %112 = vadd.xlane.f32.xlu0 %v105
    %v113 = vpop.xlane.xlu0 %112
    %vm114 = vmand %vm78, %vm90
    %vm115 = vmand %vm79, %vm91
    %vm116 = vmand %vm80, %vm92
    %vm117 = vmand %vm81, %vm93
    %v118 = vsel %vm114, 1, 0
    %v119 = vsel %vm115, 1, 0
    %v120 = vsel %vm116, 1, 0
    %v121 = vsel %vm117, 1, 0
    %v122 = vcvt.s32.f32 %v118
    %v123 = vcvt.s32.f32 %v119
    %v124 = vcvt.s32.f32 %v120
    %v125 = vcvt.s32.f32 %v121
    %vm126 = vcmask 7168
    %v127 = vsel %vm126, %v122, 0.0
    %v128 = vsel %vm126, %v123, 0.0
    %v129 = vadd.f32 %v127, %v128
    %v130 = vsel %vm126, %v124, 0.0
    %v131 = vadd.f32 %v129, %v130
    %v132 = vsel %vm126, %v125, 0.0
    %v133 = vadd.f32 %v131, %v132
    %134 = vadd.xlane.f32.xlu0 %v133
    %v135 = vpop.xlane.xlu0 %134
    %v136 = vrot.slane %v135, 4
    %v137 = vadd.f32 %v135, %v136
    %v138 = vrot.slane %v137, 2
    %v139 = vadd.f32 %v137, %v138
    %v140 = vrot.slane %v139, 1
    %v141 = vadd.f32 %v139, %v140
    %s142 = vtos %v141
    %v143 = vstv %s142
    %v144 = vsel %vm114, %v107, inf
    %v145 = vsel %vm115, %v109, inf
    %v146 = vsel %vm116, %v111, inf
    %v147 = vsel %vm117, %v113, inf
    %v148 = vsel %vm126, %v144, inf
    %v149 = vsel %vm126, %v145, inf
    %v150 = vsel %vm126, %v146, inf
    %v151 = vsel %vm126, %v147, inf
    %v152 = vmin.f32 %v148, %v149
    %v153 = vmin.f32 %v150, %v151
    %v154 = vmin.f32 %v152, %v153
    %155 = vmin.xlane.f32.xlu0 %v154
    %v156 = vpop.xlane.xlu0 %155
    %v157 = vrot.slane %v156, 4
    %v158 = vmin.f32 %v156, %v157
    %v159 = vrot.slane %v158, 2
    %v160 = vmin.f32 %v158, %v159
    %v161 = vrot.slane %v160, 1
    %v162 = vmin.f32 %v160, %v161
    %s163 = vtos %v162
    %v164 = vstv %s163
    %vm165 = vcmp.eq.f32.partialorder %v144, %v164
    %vm166 = vcmp.eq.f32.partialorder %v145, %v164
    %vm167 = vcmp.eq.f32.partialorder %v146, %v164
    %vm168 = vcmp.eq.f32.partialorder %v147, %v164
    %v169 = vsel %vm165, %v63, 32.0
    %v170 = vsel %vm166, %v64, 32.0
    %v171 = vsel %vm167, %v65, 32.0
    %v172 = vsel %vm168, %v66, 32.0
    %v173 = vsel %vm126, %v169, inf
    %v174 = vsel %vm126, %v170, inf
    %v175 = vsel %vm126, %v171, inf
    %v176 = vsel %vm126, %v172, inf
    %v177 = vmin.f32 %v173, %v174
    %v178 = vmin.f32 %v175, %v176
    %v179 = vmin.f32 %v177, %v178
    %180 = vmin.xlane.f32.xlu0 %v179
    %v181 = vpop.xlane.xlu0 %180
    %v182 = vrot.slane %v181, 4
    %v183 = vmin.f32 %v181, %v182
    %v184 = vrot.slane %v183, 2
    %v185 = vmin.f32 %v183, %v184
    %v186 = vrot.slane %v185, 1
    %v187 = vmin.f32 %v185, %v186
    %s188 = vtos %v187
    %v189 = vstv %s188
    %v190 = vrsqrt.pop %v164
    %v191 = vmul.f32 %v164, %v190
    %vm192 = vcmp.eq.f32.partialorder %v164, inf
    %v193 = vsel %vm192, %v164, %v191
    %vm194 = vcmp.eq.f32.partialorder %v164, 0.0
    %v195 = vand.u32 %v164, 2147483648
    %v196 = vsel %vm194, %v195, %v193
    %vm197 = vcmp.gt.f32.partialorder %v143, 0.0
    %v198 = vstv %s39
    %vm199 = vcmp.lt.f32.partialorder %v196, %v198
    %vm200 = vmand %vm197, %vm199
    %s201 = scvt.s32.f32 %s42
    %v202 = vstv %s201
    %v203 = vadd.f32 %v202, %v143
    %v204 = vsel %vm200, %v189, %v203
    %vm205 = vcmp.eq.f32.partialorder %v63, %v204
    %vm206 = vcmp.eq.f32.partialorder %v64, %v204
    %vm207 = vcmp.eq.f32.partialorder %v65, %v204
    %vm208 = vcmp.eq.f32.partialorder %v66, %v204
    %v209 = vsel %vm205, 1, 0
    %v210 = vsel %vm206, 1, 0
    %v211 = vsel %vm207, 1, 0
    %v212 = vsel %vm208, 1, 0
    %v213 = vcvt.s32.f32 %v209
    %v214 = vcvt.s32.f32 %v210
    %v215 = vcvt.s32.f32 %v211
    %v216 = vcvt.s32.f32 %v212
    %v217 = vmul.f32 %v213, %v86
    %v218 = vmul.f32 %v214, %v87
    %v219 = vmul.f32 %v215, %v88
    %v220 = vmul.f32 %v216, %v89
    %222 = vset.pattern.permute.xlu0 0
    %223 = vperm.xlu0 %222, %v54
    %v224 = vpop.permute.xlu0 %223
    %227 = vset.pattern.permute.xlu0 0
    %228 = vperm.xlu0 %227, %v55
    %v229 = vpop.permute.xlu0 %228
    %232 = vset.pattern.permute.xlu0 0
    %233 = vperm.xlu0 %232, %v56
    %v234 = vpop.permute.xlu0 %233
    %237 = vset.pattern.permute.xlu0 0
    %238 = vperm.xlu0 %237, %v57
    %v239 = vpop.permute.xlu0 %238
    %v241 = vmul.f32 %v50, %v224
    %v242 = vmul.f32 %v51, %v229
    %v243 = vmul.f32 %v52, %v234
    %v244 = vmul.f32 %v53, %v239
    %v245 = vadd.f32 %v241, %v48
    %v246 = vadd.f32 %v242, %v48
    %v247 = vadd.f32 %v243, %v48
    %v248 = vadd.f32 %v244, %v48
    %v249 = vadd.f32 %v54, 1.0
    %v250 = vadd.f32 %v55, 1.0
    %v251 = vadd.f32 %v56, 1.0
    %v252 = vadd.f32 %v57, 1.0
    %254 = vset.pattern.permute.xlu0 0
    %255 = vperm.xlu0 %254, %v249
    %v256 = vpop.permute.xlu0 %255
    %259 = vset.pattern.permute.xlu0 0
    %260 = vperm.xlu0 %259, %v250
    %v261 = vpop.permute.xlu0 %260
    %264 = vset.pattern.permute.xlu0 0
    %265 = vperm.xlu0 %264, %v251
    %v266 = vpop.permute.xlu0 %265
    %269 = vset.pattern.permute.xlu0 0
    %270 = vperm.xlu0 %269, %v252
    %v271 = vpop.permute.xlu0 %270
    %v273 = vrcp.pop %v256
    %v274 = vmul.f32 %v245, %v273
    %v275 = vrcp.pop %v261
    %v276 = vmul.f32 %v246, %v275
    %v277 = vrcp.pop %v266
    %v278 = vmul.f32 %v247, %v277
    %v279 = vrcp.pop %v271
    %v280 = vmul.f32 %v248, %v279
    %v281 = vsel %vm200, 1, 0
    %vm282 = vcmp.eq.s32.totalorder %v281, 1
    %v283 = vsel %vm282, %v274, %v48
    %v284 = vsel %vm282, %v276, %v48
    %v285 = vsel %vm282, %v278, %v48
    %v286 = vsel %vm282, %v280, %v48
    %vm287 = vcmp.gt.f32.partialorder %v217, 0.5
    %vm288 = vcmp.gt.f32.partialorder %v218, 0.5
    %vm289 = vcmp.gt.f32.partialorder %v219, 0.5
    %vm290 = vcmp.gt.f32.partialorder %v220, 0.5
    %v291 = vsel %vm287, 1, 0
    %v292 = vsel %vm288, 1, 0
    %v293 = vsel %vm289, 1, 0
    %v294 = vsel %vm290, 1, 0
    %vm295 = vcmp.eq.s32.totalorder %v291, 1
    %vm296 = vcmp.eq.s32.totalorder %v292, 1
    %vm297 = vcmp.eq.s32.totalorder %v293, 1
    %vm298 = vcmp.eq.s32.totalorder %v294, 1
    %v299 = vsel %vm295, %v283, %v50
    %v300 = vsel %vm296, %v284, %v51
    %v301 = vsel %vm297, %v285, %v52
    %v302 = vsel %vm298, %v286, %v53
    %v303 = vadd.f32 %v54, %v217
    %v304 = vadd.f32 %v55, %v218
    %v305 = vadd.f32 %v56, %v219
    %v306 = vadd.f32 %v57, %v220
    %307 = vst [vmem:[%s5] sm:$0xff] %v299
    %308 = vst [vmem:[%s5 + $0x8] sm:$0xff] %v300
    %309 = vst [vmem:[%s5 + $0x10] sm:$0xff] %v301
    %310 = vst [vmem:[%s5 + $0x18] sm:$0xff] %v302
    %311 = vst.msk [vmem:[%s6] sm:$0xff] %vm126, %v303
    %312 = vst.msk [vmem:[%s6 + $0x8] sm:$0xff] %vm126, %v304
    %313 = vst.msk [vmem:[%s6 + $0x10] sm:$0xff] %vm126, %v305
    %314 = vst.msk [vmem:[%s6 + $0x18] sm:$0xff] %vm126, %v306
    %v315 = vsub.f32 %v48, %v299
    %v316 = vsub.f32 %v48, %v300
    %v317 = vsub.f32 %v48, %v301
    %v318 = vsub.f32 %v48, %v302
    %v319 = vadd.f32 %v315, 1e-06
    %v320 = vadd.f32 %v316, 1e-06
    %v321 = vadd.f32 %v317, 1e-06
    %v322 = vadd.f32 %v318, 1e-06
    %v323 = vmul.f32 %v319, %v319
    %v324 = vmul.f32 %v320, %v320
    %v325 = vmul.f32 %v321, %v321
    %v326 = vmul.f32 %v322, %v322
    %327 = vadd.xlane.f32.xlu0 %v323
    %v328 = vpop.xlane.xlu0 %327
    %329 = vadd.xlane.f32.xlu0 %v324
    %v330 = vpop.xlane.xlu0 %329
    %331 = vadd.xlane.f32.xlu0 %v325
    %v332 = vpop.xlane.xlu0 %331
    %333 = vadd.xlane.f32.xlu0 %v326
    %v334 = vpop.xlane.xlu0 %333
    %vm335 = vcmp.gt.f32.partialorder %v303, 0.0
    %vm336 = vcmp.gt.f32.partialorder %v304, 0.0
    %vm337 = vcmp.gt.f32.partialorder %v305, 0.0
    %vm338 = vcmp.gt.f32.partialorder %v306, 0.0
    %v339 = vsel %vm335, 1, 0
    %v340 = vsel %vm336, 1, 0
    %v341 = vsel %vm337, 1, 0
    %v342 = vsel %vm338, 1, 0
    %v343 = vcvt.s32.f32 %v339
    %v344 = vcvt.s32.f32 %v340
    %v345 = vcvt.s32.f32 %v341
    %v346 = vcvt.s32.f32 %v342
    %s347 = ssub.f32 0.0, %s40
    %v348 = vstv %s347
    %v349 = vmul.f32 %v348, %v328
    %v350 = vmul.f32 %v348, %v330
    %v351 = vmul.f32 %v348, %v332
    %v352 = vmul.f32 %v348, %v334
    %v353 = vmul.f32 %v349, 1.442695
    %v354 = vpow.pop %v353
    %v355 = vmul.f32 %v350, 1.442695
    %v356 = vpow.pop %v355
    %v357 = vmul.f32 %v351, 1.442695
    %v358 = vpow.pop %v357
    %v359 = vmul.f32 %v352, 1.442695
    %v360 = vpow.pop %v359
    %v361 = vmul.f32 %v354, %v343
    %v362 = vmul.f32 %v356, %v344
    %v363 = vmul.f32 %v358, %v345
    %v364 = vmul.f32 %v360, %v346
    %v365 = vsel %vm126, %v361, 0.0
    %v366 = vsel %vm126, %v362, 0.0
    %v367 = vadd.f32 %v365, %v366
    %v368 = vsel %vm126, %v363, 0.0
    %v369 = vadd.f32 %v367, %v368
    %v370 = vsel %vm126, %v364, 0.0
    %v371 = vadd.f32 %v369, %v370
    %372 = vadd.xlane.f32.xlu0 %v371
    %v373 = vpop.xlane.xlu0 %372
    %v374 = vrot.slane %v373, 4
    %v375 = vadd.f32 %v373, %v374
    %v376 = vrot.slane %v375, 2
    %v377 = vadd.f32 %v375, %v376
    %v378 = vrot.slane %v377, 1
    %v379 = vadd.f32 %v377, %v378
    %s380 = vtos %v379
    %v381 = vstv %s380
    %v382 = vmul.f32 %v361, %v86
    %v383 = vmul.f32 %v362, %v87
    %v384 = vmul.f32 %v363, %v88
    %v385 = vmul.f32 %v364, %v89
    %v386 = vsel %vm126, %v382, 0.0
    %v387 = vsel %vm126, %v383, 0.0
    %v388 = vadd.f32 %v386, %v387
    %v389 = vsel %vm126, %v384, 0.0
    %v390 = vadd.f32 %v388, %v389
    %v391 = vsel %vm126, %v385, 0.0
    %v392 = vadd.f32 %v390, %v391
    %393 = vadd.xlane.f32.xlu0 %v392
    %v394 = vpop.xlane.xlu0 %393
    %v395 = vrot.slane %v394, 4
    %v396 = vadd.f32 %v394, %v395
    %v397 = vrot.slane %v396, 2
    %v398 = vadd.f32 %v396, %v397
    %v399 = vrot.slane %v398, 1
    %v400 = vadd.f32 %v398, %v399
    %s401 = vtos %v400
    %v402 = vstv %s401
    %vm403 = vcmp.gt.f32.partialorder %v381, 0.0
    %v404 = vrcp.pop %v381
    %v405 = vmul.f32 %v402, %v404
    %v406 = vadd.f32 %v381, 0.1
    %v407 = vsel %vm403, %v405, %v406
    %v408 = vadd.f32 %v407, 1e-06
    %v409 = vlog2.pop %v408
    %v410 = vmul.f32 %v409, 0.6931472
    %v411 = vsub.f32 0.0, %v410
    %v412 = vmul.f32 %v328, %v217
    %v413 = vmul.f32 %v330, %v218
    %v414 = vmul.f32 %v332, %v219
    %v415 = vmul.f32 %v334, %v220
    %v416 = vsel %vm126, %v412, 0.0
    %v417 = vsel %vm126, %v413, 0.0
    %v418 = vadd.f32 %v416, %v417
    %v419 = vsel %vm126, %v414, 0.0
    %v420 = vadd.f32 %v418, %v419
    %v421 = vsel %vm126, %v415, 0.0
    %v422 = vadd.f32 %v420, %v421
    %423 = vadd.xlane.f32.xlu0 %v422
    %v424 = vpop.xlane.xlu0 %423
    %v425 = vrot.slane %v424, 4
    %v426 = vadd.f32 %v424, %v425
    %v427 = vrot.slane %v426, 2
    %v428 = vadd.f32 %v426, %v427
    %v429 = vrot.slane %v428, 1
    %v430 = vadd.f32 %v428, %v429
    %s431 = vtos %v430
    %v432 = vstv %s431
    %v433 = vstv %s41
    %v434 = vmul.f32 %v433, %v432
    %v435 = vadd.f32 %v411, %v434
    %v436 = vlaneseq
    %v437 = vand.u32 %v436, 127
    %vm438 = vcmp.eq.s32.totalorder %v437, 0
    %vm439 = vcmp.eq.s32.totalorder %v437, 1
    %vm440 = vcmp.eq.s32.totalorder %v437, 2
    %v441 = vcvt.s32.f32 %v281
    %v442 = vsel %vm440, %v441, 0.0
    %v443 = vsel %vm439, %v204, %v442
    %v444 = vsel %vm438, %v435, %v443
    %445 = vst [vmem:[#allocation6] sm:$0x1] %v444
    // Predicated region
    $region26: #{_gcpl_step.1} parent=1 // pred_check
      _
    $region27: #{_gcpl_step.1} parent=1 // pred_check_branch
      %447 = sbr.rel (0) target = $region29
    $region28: #{_gcpl_step.1} parent=1 // pred_region
      _
    $region29: #{_gcpl_step.1} parent=1 // pred_fallthru
      _
    // Predicated region
    $region30: #{_gcpl_step.1} parent=1 // pred_check
      _
    $region31: #{_gcpl_step.1} parent=1 // pred_check_branch
      %449 = sbr.rel (0) target = $region33
    $region32: #{_gcpl_step.1} parent=1 // pred_region
      _
    $region33: #{_gcpl_step.1} parent=1 // pred_fallthru
      _
    // Predicated region
    $region34: #{_gcpl_step.1} parent=1 // pred_check
      _
    $region35: #{_gcpl_step.1} parent=1 // pred_check_branch
      %451 = sbr.rel (0) target = $region37
    $region36: #{_gcpl_step.1} parent=1 // pred_region
      %s453 = ssub.s32 16, 16
      %454 = vsyncadd [#allocation4], %s453
      %s456 = sshll.u32 [#allocation6], 4
      %s457 = int_to_ptr.vmem [resolvable:$true] %s456
      %459 = dma.vmem_to_hbm [thread:$0]  %s457, 16, %s7, [#allocation4]
    $region37: #{_gcpl_step.1} parent=1 // pred_fallthru
      _
    // Predicated region
    $region38: #{_gcpl_step.1} parent=1 // pred_check
      _
    $region39: #{_gcpl_step.1} parent=1 // pred_check_branch
      %461 = sbr.rel (0) target = $region41
    $region40: #{_gcpl_step.1} parent=1 // pred_region
      _
    $region41: #{_gcpl_step.1} parent=1 // pred_fallthru
      _
    // Predicated region
    $region42: #{_gcpl_step.1} parent=1 // pred_check
      _
    $region43: #{_gcpl_step.1} parent=1 // pred_check_branch
      %463 = sbr.rel (0) target = $region45
    $region44: #{_gcpl_step.1} parent=1 // pred_region
      _
    $region45: #{_gcpl_step.1} parent=1 // pred_fallthru
      _
    // Predicated region
    $region46: #{_gcpl_step.1} parent=1 // pred_check
      _
    $region47: #{_gcpl_step.1} parent=1 // pred_check_branch
      %465 = sbr.rel (0) target = $region49
    $region48: #{_gcpl_step.1} parent=1 // pred_region
      %466 = dma.done [#allocation4], 16
    $region49: #{_gcpl_step.1} parent=1 // pred_fallthru
      _
    %467 = vsyncpa [#allocation4], 1
    %468 = vsyncpa [#allocation5], 1

</llo_original>
